<compile_context>
chip_gen: v6e
topology: v6e:2x2x1
jax: 0.10.0
libtpu: 0.0.40
codegen_flags: <defaults>
</compile_context>

<pallas_src>
import numpy as np

import jax
import jax.numpy as jnp
from jax.experimental import pallas as pl
from jax.experimental.pallas import tpu as pltpu


def _round_up(x, m):
    return ((x + m - 1) // m) * m


def _vae_loss_kernel(mu_ref, lv_ref,
                     cls_act_ref, cls_res_ref,
                     lp_act_ref, tgt_act_ref,
                     lp_res_ref, tgt_res_ref,
                     act_out_ref, res_out_ref, kl_out_ref,
                     acc_act, acc_res):
    step = pl.program_id(1)

    @pl.when(step == 0)
    def _init():
        acc_act[...] = jnp.zeros_like(acc_act)
        acc_res[...] = jnp.zeros_like(acc_res)

    def accumulate(lp_ref, tg_ref, cls_ref, acc):
        # lp: (tile, 128) packed log-probs; tg: (tile, 128) int8 group-broadcast
        # target ids (-1 on padding rows / lanes); cls: (1, 128) class pattern
        # (-2 on unused lanes) built once in the wrapper.
        lp = lp_ref[...].astype(jnp.float32)
        tg = tg_ref[...].astype(jnp.int32)
        cls = cls_ref[...]
        picked = jnp.where(tg == cls, lp, 0.0)
        # vreg-wise accumulation only; sublane/lane collapse deferred to the
        # wrapper after the per-core partials come back.
        acc[...] += jnp.sum(picked.reshape(-1, 8, 128), axis=0)

    accumulate(lp_act_ref, tgt_act_ref, cls_act_ref, acc_act)
    accumulate(lp_res_ref, tgt_res_ref, cls_res_ref, acc_res)

    @pl.when(step == pl.num_programs(1) - 1)
    def _finalize():
        act_out_ref[...] = acc_act[...]
        res_out_ref[...] = acc_res[...]
        # KL term: small resident (B, L) blocks; the wrapper only reads the
        # value from core 0's output block.
        # TODO(synk): for production-scale mu/log_var, tile the KL term over
        # its own grid axis instead of keeping the full arrays resident.
        mu = mu_ref[...].astype(jnp.float32)
        lv = lv_ref[...].astype(jnp.float32)
        kl = -0.5 * jnp.sum(1.0 + lv - mu * mu - jnp.exp(lv))
        kl_out_ref[...] = jnp.full((8, 128), kl, dtype=jnp.float32)


def _pack_head(lp, tgt):
    """Fold a (B, T, C) log-prob head into a lane-dense (R, 128) layout.

    G = floor(128 / C) logical rows share each 128-lane packed row; targets
    are group-broadcast int8; a (1, 128) int32 class-pattern row encodes which
    class each lane holds (-2 on the trailing unused lanes).
    """
    b, t, c = lp.shape
    n = b * t
    if c > 128:
        # TODO(synk): fall back to an un-folded (N, round_up(C,128)) layout
        # for class counts above the 128-lane vreg width.
        raise NotImplementedError("class dimension > 128 not supported")
    g = 128 // c                 # logical rows folded per packed row
    used = g * c                 # used lanes per packed row
    r = pl.cdiv(n, g)

    lp2 = lp.reshape(n, c)
    tg2 = tgt.reshape(n).astype(jnp.int8)
    # Pad rows n -> r*g:  log-probs with 0, targets with -1 (never match).
    lp2 = jnp.pad(lp2, ((0, r * g - n), (0, 0)))
    tg2 = jnp.pad(tg2, (0, r * g - n), constant_values=-1)

    lp_packed = jnp.pad(lp2.reshape(r, used), ((0, 0), (0, 128 - used)))
    tg_packed = jnp.pad(jnp.repeat(tg2.reshape(r, g), c, axis=1),
                        ((0, 0), (0, 128 - used)), constant_values=-1)

    pat = np.full((1, 128), -2, dtype=np.int32)       # -2: unused lanes
    pat[0, :used] = np.tile(np.arange(c, dtype=np.int32), g)
    return lp_packed, tg_packed, jnp.asarray(pat), n


def vae_loss(mu, log_var, z, x_hat_param_act, x_hat_param_res, x_act, x_res,
             *, row_tile=2048, ncore=2):
    """Pallas implementation of VAE_Loss.forward. `z` is unused (as in torch)."""
    del z

    lpa, tga, cls_a, na = _pack_head(x_hat_param_act, x_act)
    lpr, tgr, cls_r, nr = _pack_head(x_hat_param_res, x_res)

    # Shared step count; per-head row tiles proportional to each head's packed
    # row count (so both heads finish together without padding the smaller one
    # up to the larger).  Tiles are multiples of 32 for the int8 targets.
    steps = max(1, pl.cdiv(max(lpa.shape[0], lpr.shape[0]), ncore * row_tile))

    def pad_head(lp, tg):
        r = lp.shape[0]
        tile = _round_up(pl.cdiv(r, ncore * steps), 32)
        rp = ncore * steps * tile
        lp = jnp.pad(lp, ((0, rp - r), (0, 0)))
        tg = jnp.pad(tg, ((0, rp - r), (0, 0)), constant_values=-1)
        return lp, tg, tile

    lpa, tga, tile_a = pad_head(lpa, tga)
    lpr, tgr, tile_r = pad_head(lpr, tgr)

    mu2 = mu.reshape(-1, mu.shape[-1])
    lv2 = log_var.reshape(-1, log_var.shape[-1])

    def head_spec(tile):
        return pl.BlockSpec((tile, 128), lambda c, j: (c * steps + j, 0))

    def const_spec(shape):
        return pl.BlockSpec(shape, lambda c, j: (0,) * len(shape))

    out_spec = pl.BlockSpec((8, 128), lambda c, j: (c, 0))
    out_shape = jax.ShapeDtypeStruct((ncore * 8, 128), jnp.float32)

    # Explicit scoped-VMEM budget from the actual double-buffered footprint.
    blk_bytes = 2 * (tile_a * 128 * 5 + tile_r * 128 * 5)     # f32 lp + int8 tgt
    blk_bytes += 2 * (mu2.size * mu2.dtype.itemsize + lv2.size * lv2.dtype.itemsize)
    blk_bytes += 2 * 2 * 128 * 4                              # class patterns
    blk_bytes += 2 * 3 * 8 * 128 * 4 + 2 * 8 * 128 * 4        # outputs + scratch
    vmem_limit = int(min(max(2 * blk_bytes + (4 << 20), 16 << 20), 60 << 20))

    stream_bytes = sum(int(a.size) * a.dtype.itemsize
                       for a in (mu2, lv2, lpa, tga, lpr, tgr, cls_a, cls_r))
    cost = pl.CostEstimate(
        flops=int(6 * mu2.size + 4 * (lpa.size + lpr.size)),
        transcendentals=int(mu2.size),
        bytes_accessed=int(stream_bytes + 3 * ncore * 8 * 128 * 4))

    act_p, res_p, kl_p = pl.pallas_call(
        _vae_loss_kernel,
        out_shape=(out_shape, out_shape, out_shape),
        grid=(ncore, steps),
        in_specs=[
            const_spec(mu2.shape), const_spec(lv2.shape),
            const_spec((1, 128)), const_spec((1, 128)),
            head_spec(tile_a), head_spec(tile_a),
            head_spec(tile_r), head_spec(tile_r),
        ],
        out_specs=(out_spec, out_spec, out_spec),
        scratch_shapes=[pltpu.VMEM((8, 128), jnp.float32),
                        pltpu.VMEM((8, 128), jnp.float32)],
        compiler_params=pltpu.CompilerParams(
            dimension_semantics=("parallel", "arbitrary"),
            vmem_limit_bytes=vmem_limit),
        cost_estimate=cost,
    )(mu2, lv2, cls_a, cls_r, lpa, tga, lpr, tgr)

    # Tiny cross-core / cross-lane reduction + mean normalization in XLA.
    kl = kl_p[0, 0]
    recon = -(jnp.sum(act_p) * (1.0 / na) + jnp.sum(res_p) * (1.0 / nr))
    elbo = kl + recon
    return elbo, kl, recon


def _reference(mu, log_var, x_hat_act, x_hat_res, x_act, x_res):
    kl = -0.5 * jnp.sum(1 + log_var - mu ** 2 - jnp.exp(log_var))

    def nll(lp, tgt):
        lp = lp.reshape(-1, lp.shape[2])
        tgt = tgt.reshape(-1)
        return -jnp.mean(jnp.take_along_axis(lp, tgt[:, None], axis=1))

    recon = nll(x_hat_act, x_act) + nll(x_hat_res, x_res)
    return kl + recon, kl, recon


if __name__ == "__main__":
    key = jax.random.PRNGKey(0)
    kmu, klv, kz, ka, kr, kta, ktr = jax.random.split(key, 7)

    B, L = 2, 32           # batch, latent dim
    T = 8                  # sequence length
    C_ACT, C_RES = 16, 12  # class counts for the two heads

    mu = jax.random.normal(kmu, (B, L), dtype=jnp.float32)
    log_var = jax.random.normal(klv, (B, L), dtype=jnp.float32) * 0.1
    z = jax.random.normal(kz, (B, L), dtype=jnp.float32)  # unused, API parity

    x_hat_act = jax.nn.log_softmax(
        jax.random.normal(ka, (B, T, C_ACT), dtype=jnp.float32), axis=-1)
    x_hat_res = jax.nn.log_softmax(
        jax.random.normal(kr, (B, T, C_RES), dtype=jnp.float32), axis=-1)
    x_act = jax.random.randint(kta, (B, T), 0, C_ACT, dtype=jnp.int32)
    x_res = jax.random.randint(ktr, (B, T), 0, C_RES, dtype=jnp.int32)

    elbo, kl, recon = vae_loss(mu, log_var, z, x_hat_act, x_hat_res,
                               x_act, x_res)
    jax.block_until_ready((elbo, kl, recon))

    ref_elbo, ref_kl, ref_recon = _reference(mu, log_var, x_hat_act, x_hat_res,
                                             x_act, x_res)
    assert jnp.allclose(kl, ref_kl, rtol=1e-5, atol=1e-5), (kl, ref_kl)
    assert jnp.allclose(recon, ref_recon, rtol=1e-5, atol=1e-5), (recon, ref_recon)
    assert jnp.allclose(elbo, ref_elbo, rtol=1e-5, atol=1e-5), (elbo, ref_elbo)

    print("KERNEL_OK")
</pallas_src>

<mosaic_0001>
module attributes {stable_mosaic.version = 11 : i64} {
  func.func @_vae_loss_kernel(%arg0: i32, %arg1: i32, %arg2: memref<2x32xf32, #tpu.memory_space<vmem>>, %arg3: memref<2x32xf32, #tpu.memory_space<vmem>>, %arg4: memref<1x128xi32, #tpu.memory_space<vmem>>, %arg5: memref<1x128xi32, #tpu.memory_space<vmem>>, %arg6: memref<32x128xf32, #tpu.memory_space<vmem>>, %arg7: memref<32x128xi8, #tpu.memory_space<vmem>>, %arg8: memref<32x128xf32, #tpu.memory_space<vmem>>, %arg9: memref<32x128xi8, #tpu.memory_space<vmem>>, %arg10: memref<8x128xf32, #tpu.memory_space<vmem>>, %arg11: memref<8x128xf32, #tpu.memory_space<vmem>>, %arg12: memref<8x128xf32, #tpu.memory_space<vmem>>, %arg13: memref<8x128xf32, #tpu.memory_space<vmem>>, %arg14: memref<8x128xf32, #tpu.memory_space<vmem>>) attributes {dimension_semantics = [#tpu.dimension_semantics<parallel>, #tpu.dimension_semantics<arbitrary>], iteration_bounds = array<i64: 2, 1>, scalar_prefetch = 0 : i64, scratch_operands = 2 : i64, tpu.core_type = #tpu.core_type<tc>, window_params = [{pipeline_mode = #tpu.pipeline_mode<synchronous>, transform_indices = @transform_0, window_bounds = array<i64: 2, 32>}, {pipeline_mode = #tpu.pipeline_mode<synchronous>, transform_indices = @transform_1, window_bounds = array<i64: 2, 32>}, {pipeline_mode = #tpu.pipeline_mode<synchronous>, transform_indices = @transform_2, window_bounds = array<i64: 1, 128>}, {pipeline_mode = #tpu.pipeline_mode<synchronous>, transform_indices = @transform_3, window_bounds = array<i64: 1, 128>}, {transform_indices = @transform_4, window_bounds = array<i64: 32, 128>}, {transform_indices = @transform_5, window_bounds = array<i64: 32, 128>}, {transform_indices = @transform_6, window_bounds = array<i64: 32, 128>}, {transform_indices = @transform_7, window_bounds = array<i64: 32, 128>}, {transform_indices = @transform_8, window_bounds = array<i64: 8, 128>}, {transform_indices = @transform_9, window_bounds = array<i64: 8, 128>}, {transform_indices = @transform_10, window_bounds = array<i64: 8, 128>}]} {
    %c0_i32 = arith.constant 0 : i32
    %0 = arith.cmpi eq, %arg1, %c0_i32 : i32
    %1 = arith.extui %0 : i1 to i32
    %c0_i32_0 = arith.constant 0 : i32
    %2 = arith.cmpi ne, %1, %c0_i32_0 : i32
    scf.if %2 {
      %cst_25 = arith.constant 0.000000e+00 : f32
      %32 = vector.broadcast %cst_25 : f32 to vector<8x128xf32>
      %c0_26 = arith.constant 0 : index
      %c0_27 = arith.constant 0 : index
      %33 = vector.load %arg13[%c0_26, %c0_27] : memref<8x128xf32, #tpu.memory_space<vmem>>, vector<8x128xf32>
      tpu.vector_store %arg13[%c0_26, %c0_27], %32 {strides = array<i32>} : memref<8x128xf32, #tpu.memory_space<vmem>>, vector<8x128xf32>,
      %cst_28 = arith.constant 0.000000e+00 : f32
      %34 = vector.broadcast %cst_28 : f32 to vector<8x128xf32>
      %c0_29 = arith.constant 0 : index
      %c0_30 = arith.constant 0 : index
      %35 = vector.load %arg14[%c0_29, %c0_30] : memref<8x128xf32, #tpu.memory_space<vmem>>, vector<8x128xf32>
      tpu.vector_store %arg14[%c0_29, %c0_30], %34 {strides = array<i32>} : memref<8x128xf32, #tpu.memory_space<vmem>>, vector<8x128xf32>,
    } else {
    }
    %c0 = arith.constant 0 : index
    %c0_1 = arith.constant 0 : index
    %3 = vector.load %arg6[%c0, %c0_1] : memref<32x128xf32, #tpu.memory_space<vmem>>, vector<32x128xf32>
    %c0_2 = arith.constant 0 : index
    %c0_3 = arith.constant 0 : index
    %4 = vector.load %arg7[%c0_2, %c0_3] : memref<32x128xi8, #tpu.memory_space<vmem>>, vector<32x128xi8>
    %5 = arith.extsi %4 : vector<32x128xi8> to vector<32x128xi32>
    %c0_4 = arith.constant 0 : index
    %c0_5 = arith.constant 0 : index
    %6 = vector.load %arg4[%c0_4, %c0_5] : memref<1x128xi32, #tpu.memory_space<vmem>>, vector<1x128xi32>
    %7 = vector.broadcast %6 : vector<1x128xi32> to vector<32x128xi32>
    %8 = arith.cmpi eq, %5, %7 : vector<32x128xi32>
    %cst = arith.constant 0.000000e+00 : f32
    %9 = vector.broadcast %cst : f32 to vector<32x128xf32>
    %10 = arith.select %8, %3, %9 : vector<32x128xi1>, vector<32x128xf32>
    %c0_6 = arith.constant 0 : index
    %c0_7 = arith.constant 0 : index
    %11 = vector.load %arg13[%c0_6, %c0_7] : memref<8x128xf32, #tpu.memory_space<vmem>>, vector<8x128xf32>
    %12 = vector.shape_cast %10 : vector<32x128xf32> to vector<4x8x128xf32>
    %cst_8 = arith.constant dense<0.000000e+00> : vector<8x128xf32>
    %13 = vector.multi_reduction <add>, %12, %cst_8 [0] : vector<4x8x128xf32> to vector<8x128xf32>
    %14 = arith.addf %11, %13 : vector<8x128xf32>
    %c0_9 = arith.constant 0 : index
    %c0_10 = arith.constant 0 : index
    %15 = vector.load %arg13[%c0_9, %c0_10] : memref<8x128xf32, #tpu.memory_space<vmem>>, vector<8x128xf32>
    tpu.vector_store %arg13[%c0_9, %c0_10], %14 {strides = array<i32>} : memref<8x128xf32, #tpu.memory_space<vmem>>, vector<8x128xf32>,
    %c0_11 = arith.constant 0 : index
    %c0_12 = arith.constant 0 : index
    %16 = vector.load %arg8[%c0_11, %c0_12] : memref<32x128xf32, #tpu.memory_space<vmem>>, vector<32x128xf32>
    %c0_13 = arith.constant 0 : index
    %c0_14 = arith.constant 0 : index
    %17 = vector.load %arg9[%c0_13, %c0_14] : memref<32x128xi8, #tpu.memory_space<vmem>>, vector<32x128xi8>
    %18 = arith.extsi %17 : vector<32x128xi8> to vector<32x128xi32>
    %c0_15 = arith.constant 0 : index
    %c0_16 = arith.constant 0 : index
    %19 = vector.load %arg5[%c0_15, %c0_16] : memref<1x128xi32, #tpu.memory_space<vmem>>, vector<1x128xi32>
    %20 = vector.broadcast %19 : vector<1x128xi32> to vector<32x128xi32>
    %21 = arith.cmpi eq, %18, %20 : vector<32x128xi32>
    %cst_17 = arith.constant 0.000000e+00 : f32
    %22 = vector.broadcast %cst_17 : f32 to vector<32x128xf32>
    %23 = arith.select %21, %16, %22 : vector<32x128xi1>, vector<32x128xf32>
    %c0_18 = arith.constant 0 : index
    %c0_19 = arith.constant 0 : index
    %24 = vector.load %arg14[%c0_18, %c0_19] : memref<8x128xf32, #tpu.memory_space<vmem>>, vector<8x128xf32>
    %25 = vector.shape_cast %23 : vector<32x128xf32> to vector<4x8x128xf32>
    %cst_20 = arith.constant dense<0.000000e+00> : vector<8x128xf32>
    %26 = vector.multi_reduction <add>, %25, %cst_20 [0] : vector<4x8x128xf32> to vector<8x128xf32>
    %27 = arith.addf %24, %26 : vector<8x128xf32>
    %c0_21 = arith.constant 0 : index
    %c0_22 = arith.constant 0 : index
    %28 = vector.load %arg14[%c0_21, %c0_22] : memref<8x128xf32, #tpu.memory_space<vmem>>, vector<8x128xf32>
    tpu.vector_store %arg14[%c0_21, %c0_22], %27 {strides = array<i32>} : memref<8x128xf32, #tpu.memory_space<vmem>>, vector<8x128xf32>,
    %c0_i32_23 = arith.constant 0 : i32
    %29 = arith.cmpi eq, %arg1, %c0_i32_23 : i32
    %30 = arith.extui %29 : i1 to i32
    %c0_i32_24 = arith.constant 0 : i32
    %31 = arith.cmpi ne, %30, %c0_i32_24 : i32
    scf.if %31 {
      %c0_25 = arith.constant 0 : index
      %c0_26 = arith.constant 0 : index
      %32 = vector.load %arg13[%c0_25, %c0_26] : memref<8x128xf32, #tpu.memory_space<vmem>>, vector<8x128xf32>
      %c0_27 = arith.constant 0 : index
      %c0_28 = arith.constant 0 : index
      %33 = vector.load %arg10[%c0_27, %c0_28] : memref<8x128xf32, #tpu.memory_space<vmem>>, vector<8x128xf32>
      tpu.vector_store %arg10[%c0_27, %c0_28], %32 {strides = array<i32>} : memref<8x128xf32, #tpu.memory_space<vmem>>, vector<8x128xf32>,
      %c0_29 = arith.constant 0 : index
      %c0_30 = arith.constant 0 : index
      %34 = vector.load %arg14[%c0_29, %c0_30] : memref<8x128xf32, #tpu.memory_space<vmem>>, vector<8x128xf32>
      %c0_31 = arith.constant 0 : index
      %c0_32 = arith.constant 0 : index
      %35 = vector.load %arg11[%c0_31, %c0_32] : memref<8x128xf32, #tpu.memory_space<vmem>>, vector<8x128xf32>
      tpu.vector_store %arg11[%c0_31, %c0_32], %34 {strides = array<i32>} : memref<8x128xf32, #tpu.memory_space<vmem>>, vector<8x128xf32>,
      %c0_33 = arith.constant 0 : index
      %c0_34 = arith.constant 0 : index
      %36 = vector.load %arg2[%c0_33, %c0_34] : memref<2x32xf32, #tpu.memory_space<vmem>>, vector<2x32xf32>
      %c0_35 = arith.constant 0 : index
      %c0_36 = arith.constant 0 : index
      %37 = vector.load %arg3[%c0_35, %c0_36] : memref<2x32xf32, #tpu.memory_space<vmem>>, vector<2x32xf32>
      %cst_37 = arith.constant 1.000000e+00 : f32
      %38 = vector.broadcast %cst_37 : f32 to vector<2x32xf32>
      %39 = arith.addf %38, %37 : vector<2x32xf32>
      %40 = arith.mulf %36, %36 : vector<2x32xf32>
      %41 = arith.subf %39, %40 : vector<2x32xf32>
      %42 = math.exp %37 : vector<2x32xf32>
      %43 = arith.subf %41, %42 : vector<2x32xf32>
      %44 = vector.shape_cast %43 : vector<2x32xf32> to vector<1x2x32xf32>
      %cst_38 = arith.constant dense<0.000000e+00> : vector<1xf32>
      %45 = vector.multi_reduction <add>, %44, %cst_38 [1, 2] : vector<1x2x32xf32> to vector<1xf32>
      %46 = vector.shape_cast %45 : vector<1xf32> to vector<1x1x1xf32>
      %47 = vector.extract %46[0, 0, 0] : f32 from vector<1x1x1xf32>
      %cst_39 = arith.constant -5.000000e-01 : f32
      %48 = arith.mulf %cst_39, %47 : f32
      %49 = vector.broadcast %48 : f32 to vector<8x128xf32>
      %c0_40 = arith.constant 0 : index
      %c0_41 = arith.constant 0 : index
      %50 = vector.load %arg12[%c0_40, %c0_41] : memref<8x128xf32, #tpu.memory_space<vmem>>, vector<8x128xf32>
      tpu.vector_store %arg12[%c0_40, %c0_41], %49 {strides = array<i32>} : memref<8x128xf32, #tpu.memory_space<vmem>>, vector<8x128xf32>,
    } else {
    }
    return
  }
  func.func @transform_0(%arg0: i32, %arg1: i32) -> (i32, i32) {
    %c0_i32 = arith.constant 0 : i32
    %c0_i32_0 = arith.constant 0 : i32
    %c0_i32_1 = arith.constant 0 : i32
    return %c0_i32, %c0_i32_0 : i32, i32
  }
  func.func @transform_1(%arg0: i32, %arg1: i32) -> (i32, i32) {
    %c0_i32 = arith.constant 0 : i32
    %c0_i32_0 = arith.constant 0 : i32
    %c0_i32_1 = arith.constant 0 : i32
    return %c0_i32, %c0_i32_0 : i32, i32
  }
  func.func @transform_2(%arg0: i32, %arg1: i32) -> (i32, i32) {
    %c0_i32 = arith.constant 0 : i32
    %c0_i32_0 = arith.constant 0 : i32
    %c0_i32_1 = arith.constant 0 : i32
    return %c0_i32, %c0_i32_0 : i32, i32
  }
  func.func @transform_3(%arg0: i32, %arg1: i32) -> (i32, i32) {
    %c0_i32 = arith.constant 0 : i32
    %c0_i32_0 = arith.constant 0 : i32
    %c0_i32_1 = arith.constant 0 : i32
    return %c0_i32, %c0_i32_0 : i32, i32
  }
  func.func @transform_4(%arg0: i32, %arg1: i32) -> (i32, i32) {
    %c1_i32 = arith.constant 1 : i32
    %0 = arith.muli %arg0, %c1_i32 : i32
    %1 = arith.addi %0, %arg1 : i32
    %c0_i32 = arith.constant 0 : i32
    %c0_i32_0 = arith.constant 0 : i32
    return %1, %c0_i32 : i32, i32
  }
  func.func @transform_5(%arg0: i32, %arg1: i32) -> (i32, i32) {
    %c1_i32 = arith.constant 1 : i32
    %0 = arith.muli %arg0, %c1_i32 : i32
    %1 = arith.addi %0, %arg1 : i32
    %c0_i32 = arith.constant 0 : i32
    %c0_i32_0 = arith.constant 0 : i32
    return %1, %c0_i32 : i32, i32
  }
  func.func @transform_6(%arg0: i32, %arg1: i32) -> (i32, i32) {
    %c1_i32 = arith.constant 1 : i32
    %0 = arith.muli %arg0, %c1_i32 : i32
    %1 = arith.addi %0, %arg1 : i32
    %c0_i32 = arith.constant 0 : i32
    %c0_i32_0 = arith.constant 0 : i32
    return %1, %c0_i32 : i32, i32
  }
  func.func @transform_7(%arg0: i32, %arg1: i32) -> (i32, i32) {
    %c1_i32 = arith.constant 1 : i32
    %0 = arith.muli %arg0, %c1_i32 : i32
    %1 = arith.addi %0, %arg1 : i32
    %c0_i32 = arith.constant 0 : i32
    %c0_i32_0 = arith.constant 0 : i32
    return %1, %c0_i32 : i32, i32
  }
  func.func @transform_8(%arg0: i32, %arg1: i32) -> (i32, i32) {
    %c0_i32 = arith.constant 0 : i32
    %c0_i32_0 = arith.constant 0 : i32
    return %arg0, %c0_i32 : i32, i32
  }
  func.func @transform_9(%arg0: i32, %arg1: i32) -> (i32, i32) {
    %c0_i32 = arith.constant 0 : i32
    %c0_i32_0 = arith.constant 0 : i32
    return %arg0, %c0_i32 : i32, i32
  }
  func.func @transform_10(%arg0: i32, %arg1: i32) -> (i32, i32) {
    %c0_i32 = arith.constant 0 : i32
    %c0_i32_0 = arith.constant 0 : i32
    return %arg0, %c0_i32 : i32, i32
  }
}

</mosaic_0001>

<llo_original>
// kernel: tpu_custom_call.1
$region0: #{tpu_custom_call.1}
  #allocation0 [shape = 'u32[]', space=smem, size = 0x4, offset = 0x4, fixed_abs, tag = 'smem constant byte address 0x4 - core index']
  #allocation1 [shape = 'u32[144,128]{1,0:T(1,128)}', space=vmem, size = 0x12000, scoped, tag = 'internal scratch']
  #allocation2 [shape = 'f32[8,128]{1,0:T(8,128)}', space=vmem, size = 0x1000, scoped, tag = 'scratch operand']
  #allocation3 [shape = 'f32[8,128]{1,0:T(8,128)}', space=vmem, size = 0x1000, scoped, tag = 'scratch operand']
  %s0 = inlined_call_operand.hbm [shape: f32[2,32], index: 0, kind: input, shape index: {}]
  %s1 = inlined_call_operand.hbm [shape: f32[2,32], index: 1, kind: input, shape index: {}]
  %s2 = inlined_call_operand.vmem [shape: s32[1,128], index: 2, kind: input, shape index: {}]
  %s3 = inlined_call_operand.vmem [shape: s32[1,128], index: 3, kind: input, shape index: {}]
  %s4 = inlined_call_operand.hbm [shape: f32[64,128], index: 4, kind: input, shape index: {}]
  %s5 = inlined_call_operand.hbm [shape: s8[64,128], index: 5, kind: input, shape index: {}]
  %s6 = inlined_call_operand.hbm [shape: f32[64,128], index: 6, kind: input, shape index: {}]
  %s7 = inlined_call_operand.hbm [shape: s8[64,128], index: 7, kind: input, shape index: {}]
  %s8 = inlined_call_operand.hbm [shape: f32[16,128], index: 8, kind: output, shape index: {0}]
  %s9 = inlined_call_operand.hbm [shape: f32[16,128], index: 9, kind: output, shape index: {1}]
  %s10 = inlined_call_operand.hbm [shape: f32[16,128], index: 10, kind: output, shape index: {2}]
  %11 = xla_tuple %s8, %s9, %s10
  %s12 = sld [smem:[#allocation0]]
  $region113: #{tpu_custom_call.1} parent=0
    _
  %s14 = ssub.s32 1, %s12
  %s15 = scalar_select 0, %s14, %s12
  $region1: #{tpu_custom_call.1} parent=0
    #allocation4 [shape = 'u8[1024]{0}', space=vmem, size = 0x400, scoped, tag = 'input window, operand 0, single buffered']
    #allocation5 [shape = 's32[2]{0}', space=sflag, size = 0x8, scoped, tag = 'scoped memory for tpu_custom_call.1']
    #allocation6 [shape = 's32[2]{0}', space=sflag, size = 0x8, scoped, tag = 'scoped memory for tpu_custom_call.1']
    #allocation7 [shape = 'u8[1024]{0}', space=vmem, size = 0x400, scoped, tag = 'input window, operand 1, single buffered']
    #allocation8 [shape = 's32[1]{0}', space=sflag, size = 0x4, scoped, tag = 'scoped memory for tpu_custom_call.1']
    #allocation9 [shape = 'u8[32768]{0}', space=vmem, size = 0x8000, scoped, tag = 'input window, operand 4']
    #allocation10 [shape = 'u8[8192]{0}', space=vmem, size = 0x2000, scoped, tag = 'input window, operand 5']
    #allocation11 [shape = 'u8[32768]{0}', space=vmem, size = 0x8000, scoped, tag = 'input window, operand 6']
    #allocation12 [shape = 'u8[8192]{0}', space=vmem, size = 0x2000, scoped, tag = 'input window, operand 7']
    #allocation13 [shape = 'u8[8192]{0}', space=vmem, size = 0x2000, scoped, tag = 'output window, operand 0']
    #allocation14 [shape = 'u8[8192]{0}', space=vmem, size = 0x2000, scoped, tag = 'output window, operand 1']
    #allocation15 [shape = 's32[2]{0}', space=sflag, size = 0x8, scoped, tag = 'scoped memory for tpu_custom_call.1']
    #allocation16 [shape = 'u8[8192]{0}', space=vmem, size = 0x2000, scoped, tag = 'output window, operand 2']
    %16 = vsyncpa [#allocation5], 0
    %17 = vsyncpa [#allocation8], 0
    %18 = vsyncpa [#allocation6], 0
    %s19 = scalar_lea.sflag [#allocation6], 1
    %20 = vsyncpa %s19, 0
    %21 = vsyncpa [#allocation15], 0
    %s22 = scalar_lea.sflag [#allocation15], 1
    %23 = vsyncpa %s22, 0
    loop: start=0, step=1, limit=4
    $region2: #{tpu_custom_call.1} parent=1 // loop_pre_header
      _
    $region3: #{tpu_custom_call.1} parent=1 // loop_header
      %s25 = sphi 0, %s29
      %p26 = scmp.ge.s32.totalorder %s25, 4
      %s32 = sphi 0, %s44
      %s33 = sphi 0, %s40
      %s34 = sphi 0, %s32
      %s35 = sphi 0, %s33
      %s36 = sphi 0, %s34
      %s37 = sphi 0, %s35
      %s45 = sphi 0, %s45
      %s47 = sphi 0, %s45
      %s48 = sphi 0, %s47
      %s62 = sphi 0, %s48
      %s66 = sphi 0, %s66
      %s68 = sphi 0, %s66
      %s69 = sphi 0, %s68
      %s83 = sphi 0, %s69
      %s87 = sphi 0, %s87
      %s89 = sphi 0, %s87
      %s90 = sphi 0, %s89
      %s104 = sphi 0, %s90
      %s108 = sphi 0, %s108
      %s110 = sphi 0, %s108
      %s111 = sphi 0, %s110
      %s125 = sphi 0, %s111
      %s133 = sphi 0, %s135
      %s136 = sphi 0, %s133
      %s137 = sphi 0, %s136
      %s153 = sphi 0, %s137
      %s161 = sphi 0, %s163
      %s164 = sphi 0, %s161
      %s165 = sphi 0, %s164
      %s181 = sphi 0, %s165
      %s189 = sphi 0, %s191
      %s192 = sphi 0, %s189
      %s193 = sphi 0, %s192
      %s209 = sphi 0, %s193
      %s217 = sphi 0, %s219
      %s220 = sphi 0, %s217
      %s221 = sphi 0, %s220
      %s237 = sphi 0, %s221
      %s243 = sphi 0, %s245
      %s246 = sphi 0, %s243
      %s247 = sphi 0, %s246
      %s263 = sphi 0, %s247
      %s269 = sphi 0, %s271
      %s272 = sphi 0, %s269
      %s273 = sphi 0, %s272
      %s289 = sphi 0, %s273
      %s295 = sphi 0, %s297
      %s298 = sphi 0, %s295
      %s299 = sphi 0, %s298
      %s315 = sphi 0, %s299
    $region4: #{tpu_custom_call.1} parent=1 // loop_header_branch
      %28 = sbr.rel (%p26) target = $region8
    $region5: #{tpu_custom_call.1} parent=1 // loop_body
      %s30 = ssub.s32 %s25, 1
      %s31 = ssub.s32 %s25, 2
      %s38 = sadd.s32 1, %s33
      %p39 = scmp.ge.s32.totalorder %s38, 1
      %s40 = scalar_select %p39, 0, %s38
      %s41 = sadd.s32 1, %s32
      %s42 = scalar_select %p39, %s41, %s32
      %p43 = scmp.ge.s32.totalorder %s42, 2
      %s44 = scalar_select %p43, 0, %s42
      %s46 = sadd.s32 %s45, 1
      %p49 = scmp.eq.s32.totalorder %s25, 1
      %p50 = scmp.ne.s32.totalorder %s45, %s47
      %p51 = scmp.eq.s32.totalorder %s25, 0
      %p52 = por %p50, %p51
      %p53 = scmp.ne.s32.totalorder %s45, %s47
      %p54 = scmp.eq.s32.totalorder %s30, 1
      %p55 = por %p53, %p54
      %p56 = scmp.ne.s32.totalorder %s47, %s48
      %p57 = scmp.eq.s32.totalorder %s30, 0
      %p58 = por %p56, %p57
      %p59 = scmp.ne.s32.totalorder %s47, %s48
      %p60 = scmp.eq.s32.totalorder %s31, 1
      %p61 = por %p59, %p60
      %p63 = scmp.ne.s32.totalorder %s48, %s62
      %p64 = scmp.eq.s32.totalorder %s31, 0
      %p65 = por %p63, %p64
      %s67 = sadd.s32 %s66, 1
      %p70 = scmp.eq.s32.totalorder %s25, 1
      %p71 = scmp.ne.s32.totalorder %s66, %s68
      %p72 = scmp.eq.s32.totalorder %s25, 0
      %p73 = por %p71, %p72
      %p74 = scmp.ne.s32.totalorder %s66, %s68
      %p75 = scmp.eq.s32.totalorder %s30, 1
      %p76 = por %p74, %p75
      %p77 = scmp.ne.s32.totalorder %s68, %s69
      %p78 = scmp.eq.s32.totalorder %s30, 0
      %p79 = por %p77, %p78
      %p80 = scmp.ne.s32.totalorder %s68, %s69
      %p81 = scmp.eq.s32.totalorder %s31, 1
      %p82 = por %p80, %p81
      %p84 = scmp.ne.s32.totalorder %s69, %s83
      %p85 = scmp.eq.s32.totalorder %s31, 0
      %p86 = por %p84, %p85
      %s88 = sadd.s32 %s87, 1
      %p91 = scmp.eq.s32.totalorder %s25, 1
      %p92 = scmp.ne.s32.totalorder %s87, %s89
      %p93 = scmp.eq.s32.totalorder %s25, 0
      %p94 = por %p92, %p93
      %p95 = scmp.ne.s32.totalorder %s87, %s89
      %p96 = scmp.eq.s32.totalorder %s30, 1
      %p97 = por %p95, %p96
      %p98 = scmp.ne.s32.totalorder %s89, %s90
      %p99 = scmp.eq.s32.totalorder %s30, 0
      %p100 = por %p98, %p99
      %p101 = scmp.ne.s32.totalorder %s89, %s90
      %p102 = scmp.eq.s32.totalorder %s31, 1
      %p103 = por %p101, %p102
      %p105 = scmp.ne.s32.totalorder %s90, %s104
      %p106 = scmp.eq.s32.totalorder %s31, 0
      %p107 = por %p105, %p106
      %s109 = sadd.s32 %s108, 1
      %p112 = scmp.eq.s32.totalorder %s25, 1
      %p113 = scmp.ne.s32.totalorder %s108, %s110
      %p114 = scmp.eq.s32.totalorder %s25, 0
      %p115 = por %p113, %p114
      %p116 = scmp.ne.s32.totalorder %s108, %s110
      %p117 = scmp.eq.s32.totalorder %s30, 1
      %p118 = por %p116, %p117
      %p119 = scmp.ne.s32.totalorder %s110, %s111
      %p120 = scmp.eq.s32.totalorder %s30, 0
      %p121 = por %p119, %p120
      %p122 = scmp.ne.s32.totalorder %s110, %s111
      %p123 = scmp.eq.s32.totalorder %s31, 1
      %p124 = por %p122, %p123
      %p126 = scmp.ne.s32.totalorder %s111, %s125
      %p127 = scmp.eq.s32.totalorder %s31, 0
      %p128 = por %p126, %p127
      %s129 = sadd.s32 %s32, %s33
      %s130 = sadd.s32 %s44, %s40
      %s131 = ssub.s32 %s129, %s130
      %p132 = scmp.eq.s32.totalorder %s131, 0
      %s134 = sadd.s32 %s133, 1
      %s135 = scalar_select %p132, %s133, %s134
      %p138 = pneg %p132
      %p139 = scmp.eq.s32.totalorder %s25, 1
      %p140 = por %p138, %p139
      %p141 = scmp.ne.s32.totalorder %s133, %s136
      %p142 = scmp.eq.s32.totalorder %s25, 0
      %p143 = por %p141, %p142
      %p144 = scmp.ne.s32.totalorder %s133, %s136
      %p145 = scmp.eq.s32.totalorder %s30, 1
      %p146 = por %p144, %p145
      %p147 = scmp.ne.s32.totalorder %s136, %s137
      %p148 = scmp.eq.s32.totalorder %s30, 0
      %p149 = por %p147, %p148
      %p150 = scmp.ne.s32.totalorder %s136, %s137
      %p151 = scmp.eq.s32.totalorder %s31, 1
      %p152 = por %p150, %p151
      %p154 = scmp.ne.s32.totalorder %s137, %s153
      %p155 = scmp.eq.s32.totalorder %s31, 0
      %p156 = por %p154, %p155
      %s157 = sadd.s32 %s32, %s33
      %s158 = sadd.s32 %s44, %s40
      %s159 = ssub.s32 %s157, %s158
      %p160 = scmp.eq.s32.totalorder %s159, 0
      %s162 = sadd.s32 %s161, 1
      %s163 = scalar_select %p160, %s161, %s162
      %p166 = pneg %p160
      %p167 = scmp.eq.s32.totalorder %s25, 1
      %p168 = por %p166, %p167
      %p169 = scmp.ne.s32.totalorder %s161, %s164
      %p170 = scmp.eq.s32.totalorder %s25, 0
      %p171 = por %p169, %p170
      %p172 = scmp.ne.s32.totalorder %s161, %s164
      %p173 = scmp.eq.s32.totalorder %s30, 1
      %p174 = por %p172, %p173
      %p175 = scmp.ne.s32.totalorder %s164, %s165
      %p176 = scmp.eq.s32.totalorder %s30, 0
      %p177 = por %p175, %p176
      %p178 = scmp.ne.s32.totalorder %s164, %s165
      %p179 = scmp.eq.s32.totalorder %s31, 1
      %p180 = por %p178, %p179
      %p182 = scmp.ne.s32.totalorder %s165, %s181
      %p183 = scmp.eq.s32.totalorder %s31, 0
      %p184 = por %p182, %p183
      %s185 = sadd.s32 %s32, %s33
      %s186 = sadd.s32 %s44, %s40
      %s187 = ssub.s32 %s185, %s186
      %p188 = scmp.eq.s32.totalorder %s187, 0
      %s190 = sadd.s32 %s189, 1
      %s191 = scalar_select %p188, %s189, %s190
      %p194 = pneg %p188
      %p195 = scmp.eq.s32.totalorder %s25, 1
      %p196 = por %p194, %p195
      %p197 = scmp.ne.s32.totalorder %s189, %s192
      %p198 = scmp.eq.s32.totalorder %s25, 0
      %p199 = por %p197, %p198
      %p200 = scmp.ne.s32.totalorder %s189, %s192
      %p201 = scmp.eq.s32.totalorder %s30, 1
      %p202 = por %p200, %p201
      %p203 = scmp.ne.s32.totalorder %s192, %s193
      %p204 = scmp.eq.s32.totalorder %s30, 0
      %p205 = por %p203, %p204
      %p206 = scmp.ne.s32.totalorder %s192, %s193
      %p207 = scmp.eq.s32.totalorder %s31, 1
      %p208 = por %p206, %p207
      %p210 = scmp.ne.s32.totalorder %s193, %s209
      %p211 = scmp.eq.s32.totalorder %s31, 0
      %p212 = por %p210, %p211
      %s213 = sadd.s32 %s32, %s33
      %s214 = sadd.s32 %s44, %s40
      %s215 = ssub.s32 %s213, %s214
      %p216 = scmp.eq.s32.totalorder %s215, 0
      %s218 = sadd.s32 %s217, 1
      %s219 = scalar_select %p216, %s217, %s218
      %p222 = pneg %p216
      %p223 = scmp.eq.s32.totalorder %s25, 1
      %p224 = por %p222, %p223
      %p225 = scmp.ne.s32.totalorder %s217, %s220
      %p226 = scmp.eq.s32.totalorder %s25, 0
      %p227 = por %p225, %p226
      %p228 = scmp.ne.s32.totalorder %s217, %s220
      %p229 = scmp.eq.s32.totalorder %s30, 1
      %p230 = por %p228, %p229
      %p231 = scmp.ne.s32.totalorder %s220, %s221
      %p232 = scmp.eq.s32.totalorder %s30, 0
      %p233 = por %p231, %p232
      %p234 = scmp.ne.s32.totalorder %s220, %s221
      %p235 = scmp.eq.s32.totalorder %s31, 1
      %p236 = por %p234, %p235
      %p238 = scmp.ne.s32.totalorder %s221, %s237
      %p239 = scmp.eq.s32.totalorder %s31, 0
      %p240 = por %p238, %p239
      %s241 = ssub.s32 %s32, %s44
      %p242 = scmp.eq.s32.totalorder %s241, 0
      %s244 = sadd.s32 %s243, 1
      %s245 = scalar_select %p242, %s243, %s244
      %p248 = pneg %p242
      %p249 = scmp.eq.s32.totalorder %s25, 1
      %p250 = por %p248, %p249
      %p251 = scmp.ne.s32.totalorder %s243, %s246
      %p252 = scmp.eq.s32.totalorder %s25, 0
      %p253 = por %p251, %p252
      %p254 = scmp.ne.s32.totalorder %s243, %s246
      %p255 = scmp.eq.s32.totalorder %s30, 1
      %p256 = por %p254, %p255
      %p257 = scmp.ne.s32.totalorder %s246, %s247
      %p258 = scmp.eq.s32.totalorder %s30, 0
      %p259 = por %p257, %p258
      %p260 = scmp.ne.s32.totalorder %s246, %s247
      %p261 = scmp.eq.s32.totalorder %s31, 1
      %p262 = por %p260, %p261
      %p264 = scmp.ne.s32.totalorder %s247, %s263
      %p265 = scmp.eq.s32.totalorder %s31, 0
      %p266 = por %p264, %p265
      %s267 = ssub.s32 %s32, %s44
      %p268 = scmp.eq.s32.totalorder %s267, 0
      %s270 = sadd.s32 %s269, 1
      %s271 = scalar_select %p268, %s269, %s270
      %p274 = pneg %p268
      %p275 = scmp.eq.s32.totalorder %s25, 1
      %p276 = por %p274, %p275
      %p277 = scmp.ne.s32.totalorder %s269, %s272
      %p278 = scmp.eq.s32.totalorder %s25, 0
      %p279 = por %p277, %p278
      %p280 = scmp.ne.s32.totalorder %s269, %s272
      %p281 = scmp.eq.s32.totalorder %s30, 1
      %p282 = por %p280, %p281
      %p283 = scmp.ne.s32.totalorder %s272, %s273
      %p284 = scmp.eq.s32.totalorder %s30, 0
      %p285 = por %p283, %p284
      %p286 = scmp.ne.s32.totalorder %s272, %s273
      %p287 = scmp.eq.s32.totalorder %s31, 1
      %p288 = por %p286, %p287
      %p290 = scmp.ne.s32.totalorder %s273, %s289
      %p291 = scmp.eq.s32.totalorder %s31, 0
      %p292 = por %p290, %p291
      %s293 = ssub.s32 %s32, %s44
      %p294 = scmp.eq.s32.totalorder %s293, 0
      %s296 = sadd.s32 %s295, 1
      %s297 = scalar_select %p294, %s295, %s296
      %p300 = pneg %p294
      %p301 = scmp.eq.s32.totalorder %s25, 1
      %p302 = por %p300, %p301
      %p303 = scmp.ne.s32.totalorder %s295, %s298
      %p304 = scmp.eq.s32.totalorder %s25, 0
      %p305 = por %p303, %p304
      %p306 = scmp.ne.s32.totalorder %s295, %s298
      %p307 = scmp.eq.s32.totalorder %s30, 1
      %p308 = por %p306, %p307
      %p309 = scmp.ne.s32.totalorder %s298, %s299
      %p310 = scmp.eq.s32.totalorder %s30, 0
      %p311 = por %p309, %p310
      %p312 = scmp.ne.s32.totalorder %s298, %s299
      %p313 = scmp.eq.s32.totalorder %s31, 1
      %p314 = por %p312, %p313
      %p316 = scmp.ne.s32.totalorder %s299, %s315
      %p317 = scmp.eq.s32.totalorder %s31, 0
      %p318 = por %p316, %p317
      %p319 = scmp.le.s32.totalorder 1, %s25
      %p320 = scmp.lt.s32.totalorder %s25, 3
      %p321 = pnand %p319, %p320
      %p322 = pneg %p321
      // Predicated region
      $region9: #{tpu_custom_call.1} parent=5 // pred_check
        _
      $region10: #{tpu_custom_call.1} parent=5 // pred_check_branch
        %324 = sbr.rel (%p321) target = $region12
      $region11: #{tpu_custom_call.1} parent=5 // pred_region
        %s325 = ssub.s32 %s25, 1
        // Predicated region
        $region13: #{tpu_custom_call.1} parent=11 // pred_check
          %p326 = pneg %p58
        $region14: #{tpu_custom_call.1} parent=11 // pred_check_branch
          %328 = sbr.rel (%p326) target = $region16
        $region15: #{tpu_custom_call.1} parent=11 // pred_region
          %s330 = ssub.s32 32, 32
          %331 = vsyncadd [#allocation5], %s330
          %s333 = sshll.u32 [#allocation4], 4
          %s334 = int_to_ptr.vmem [resolvable:$true] %s333
          %336 = dma.hbm_to_vmem [thread:$0]  %s0, 32, %s334, [#allocation5]
        $region16: #{tpu_custom_call.1} parent=11 // pred_fallthru
          _
        // Predicated region
        $region17: #{tpu_custom_call.1} parent=11 // pred_check
          %p337 = pneg %p79
        $region18: #{tpu_custom_call.1} parent=11 // pred_check_branch
          %339 = sbr.rel (%p337) target = $region20
        $region19: #{tpu_custom_call.1} parent=11 // pred_region
          %s341 = ssub.s32 32, 32
          %342 = vsyncadd [#allocation8], %s341
          %s344 = sshll.u32 [#allocation7], 4
          %s345 = int_to_ptr.vmem [resolvable:$true] %s344
          %347 = dma.hbm_to_vmem [thread:$0]  %s1, 32, %s345, [#allocation8]
        $region20: #{tpu_custom_call.1} parent=11 // pred_fallthru
          _
        // Predicated region
        $region21: #{tpu_custom_call.1} parent=11 // pred_check
          %p348 = pneg %p100
        $region22: #{tpu_custom_call.1} parent=11 // pred_check_branch
          %350 = sbr.rel (%p348) target = $region24
        $region23: #{tpu_custom_call.1} parent=11 // pred_region
          _
        $region24: #{tpu_custom_call.1} parent=11 // pred_fallthru
          _
        // Predicated region
        $region25: #{tpu_custom_call.1} parent=11 // pred_check
          %p351 = pneg %p121
        $region26: #{tpu_custom_call.1} parent=11 // pred_check_branch
          %353 = sbr.rel (%p351) target = $region28
        $region27: #{tpu_custom_call.1} parent=11 // pred_region
          _
        $region28: #{tpu_custom_call.1} parent=11 // pred_fallthru
          _
      $region12: #{tpu_custom_call.1} parent=5 // pred_fallthru
        _
      %p354 = scmp.lt.s32.totalorder %s25, 2
      // Predicated region
      $region29: #{tpu_custom_call.1} parent=5 // pred_check
        %p355 = pneg %p354
      $region30: #{tpu_custom_call.1} parent=5 // pred_check_branch
        %357 = sbr.rel (%p355) target = $region32
      $region31: #{tpu_custom_call.1} parent=5 // pred_region
        // Predicated region
        $region33: #{tpu_custom_call.1} parent=31 // pred_check
          %p358 = pneg %p143
        $region34: #{tpu_custom_call.1} parent=31 // pred_check_branch
          %360 = sbr.rel (%p358) target = $region36
        $region35: #{tpu_custom_call.1} parent=31 // pred_region
          %s361 = sand.u32 %s25, 1
          %s362 = scalar_lea.sflag [#allocation5], %s361
          %s363 = sand.u32 %s133, 1
          %s364 = smul.addr %s363, 32
          %s365 = scalar_lea.vmem [#allocation9], %s364
          %s366 = sadd.s32 %s32, %s33
          %s367 = smul.u32 4, %s366
          %s369 = ssub.s32 512, 512
          %370 = vsyncadd %s362, %s369
          %s371 = smul.addr %s367, 128
          %s372 = scalar_lea.hbm %s4, %s371
          %s373 = sshll.u32 %s365, 4
          %s374 = int_to_ptr.vmem [resolvable:$true] %s373
          %379 = dma.hbm_to_vmem [thread:$0]  %s372, 512, %s374, %s362, 128, 128, 8
        $region36: #{tpu_custom_call.1} parent=31 // pred_fallthru
          _
        // Predicated region
        $region37: #{tpu_custom_call.1} parent=31 // pred_check
          %p380 = pneg %p171
        $region38: #{tpu_custom_call.1} parent=31 // pred_check_branch
          %382 = sbr.rel (%p380) target = $region40
        $region39: #{tpu_custom_call.1} parent=31 // pred_region
          %s383 = sand.u32 %s25, 1
          %s384 = scalar_lea.sflag [#allocation5], %s383
          %s385 = sand.u32 %s161, 1
          %s386 = smul.addr %s385, 8
          %s387 = scalar_lea.vmem [#allocation10], %s386
          %s388 = sadd.s32 %s32, %s33
          %s390 = ssub.s32 128, 128
          %391 = vsyncadd %s384, %s390
          %s392 = smul.addr %s388, 128
          %s393 = scalar_lea.hbm %s5, %s392
          %s395 = sshll.u32 %s387, 4
          %s396 = int_to_ptr.vmem [resolvable:$true] %s395
          %398 = dma.hbm_to_vmem [thread:$0]  %s393, 128, %s396, %s384
        $region40: #{tpu_custom_call.1} parent=31 // pred_fallthru
          _
        // Predicated region
        $region41: #{tpu_custom_call.1} parent=31 // pred_check
          %p399 = pneg %p199
        $region42: #{tpu_custom_call.1} parent=31 // pred_check_branch
          %401 = sbr.rel (%p399) target = $region44
        $region43: #{tpu_custom_call.1} parent=31 // pred_region
          %s402 = sand.u32 %s25, 1
          %s403 = scalar_lea.sflag [#allocation5], %s402
          %s404 = sand.u32 %s189, 1
          %s405 = smul.addr %s404, 32
          %s406 = scalar_lea.vmem [#allocation11], %s405
          %s407 = sadd.s32 %s32, %s33
          %s408 = smul.u32 4, %s407
          %s410 = ssub.s32 512, 512
          %411 = vsyncadd %s403, %s410
          %s412 = smul.addr %s408, 128
          %s413 = scalar_lea.hbm %s6, %s412
          %s414 = sshll.u32 %s406, 4
          %s415 = int_to_ptr.vmem [resolvable:$true] %s414
          %420 = dma.hbm_to_vmem [thread:$0]  %s413, 512, %s415, %s403, 128, 128, 8
        $region44: #{tpu_custom_call.1} parent=31 // pred_fallthru
          _
        // Predicated region
        $region45: #{tpu_custom_call.1} parent=31 // pred_check
          %p421 = pneg %p227
        $region46: #{tpu_custom_call.1} parent=31 // pred_check_branch
          %423 = sbr.rel (%p421) target = $region48
        $region47: #{tpu_custom_call.1} parent=31 // pred_region
          %s424 = sand.u32 %s25, 1
          %s425 = scalar_lea.sflag [#allocation5], %s424
          %s426 = sand.u32 %s217, 1
          %s427 = smul.addr %s426, 8
          %s428 = scalar_lea.vmem [#allocation12], %s427
          %s429 = sadd.s32 %s32, %s33
          %s431 = ssub.s32 128, 128
          %432 = vsyncadd %s425, %s431
          %s433 = smul.addr %s429, 128
          %s434 = scalar_lea.hbm %s7, %s433
          %s436 = sshll.u32 %s428, 4
          %s437 = int_to_ptr.vmem [resolvable:$true] %s436
          %439 = dma.hbm_to_vmem [thread:$0]  %s434, 128, %s437, %s425
        $region48: #{tpu_custom_call.1} parent=31 // pred_fallthru
          _
      $region32: #{tpu_custom_call.1} parent=5 // pred_fallthru
        _
      %p440 = scmp.le.s32.totalorder 1, %s25
      %p441 = scmp.lt.s32.totalorder %s25, 3
      %p442 = pnand %p440, %p441
      %p443 = pneg %p442
      // Predicated region
      $region49: #{tpu_custom_call.1} parent=5 // pred_check
        _
      $region50: #{tpu_custom_call.1} parent=5 // pred_check_branch
        %445 = sbr.rel (%p442) target = $region52
      $region51: #{tpu_custom_call.1} parent=5 // pred_region
        %s446 = ssub.s32 %s25, 1
        // Predicated region
        $region53: #{tpu_custom_call.1} parent=51 // pred_check
          %p447 = pneg %p58
        $region54: #{tpu_custom_call.1} parent=51 // pred_check_branch
          %449 = sbr.rel (%p447) target = $region56
        $region55: #{tpu_custom_call.1} parent=51 // pred_region
          %450 = dma.done [#allocation5], 32
        $region56: #{tpu_custom_call.1} parent=51 // pred_fallthru
          _
        // Predicated region
        $region57: #{tpu_custom_call.1} parent=51 // pred_check
          %p451 = pneg %p79
        $region58: #{tpu_custom_call.1} parent=51 // pred_check_branch
          %453 = sbr.rel (%p451) target = $region60
        $region59: #{tpu_custom_call.1} parent=51 // pred_region
          %454 = dma.done [#allocation8], 32
        $region60: #{tpu_custom_call.1} parent=51 // pred_fallthru
          _
        %s455 = sand.u32 %s30, 1
        %s456 = scalar_lea.sflag [#allocation5], %s455
        %s457 = sand.u32 %s136, 1
        %s458 = smul.addr %s457, 32
        %s459 = scalar_lea.vmem [#allocation9], %s458
        // Predicated region
        $region61: #{tpu_custom_call.1} parent=51 // pred_check
          %p460 = pneg %p149
        $region62: #{tpu_custom_call.1} parent=51 // pred_check_branch
          %462 = sbr.rel (%p460) target = $region64
        $region63: #{tpu_custom_call.1} parent=51 // pred_region
          %463 = dma.done %s456, 512
        $region64: #{tpu_custom_call.1} parent=51 // pred_fallthru
          _
        %s464 = sand.u32 %s30, 1
        %s465 = scalar_lea.sflag [#allocation5], %s464
        %s466 = sand.u32 %s164, 1
        %s467 = smul.addr %s466, 8
        %s468 = scalar_lea.vmem [#allocation10], %s467
        // Predicated region
        $region65: #{tpu_custom_call.1} parent=51 // pred_check
          %p469 = pneg %p177
        $region66: #{tpu_custom_call.1} parent=51 // pred_check_branch
          %471 = sbr.rel (%p469) target = $region68
        $region67: #{tpu_custom_call.1} parent=51 // pred_region
          %472 = dma.done %s465, 128
        $region68: #{tpu_custom_call.1} parent=51 // pred_fallthru
          _
        %s473 = sand.u32 %s30, 1
        %s474 = scalar_lea.sflag [#allocation5], %s473
        %s475 = sand.u32 %s192, 1
        %s476 = smul.addr %s475, 32
        %s477 = scalar_lea.vmem [#allocation11], %s476
        // Predicated region
        $region69: #{tpu_custom_call.1} parent=51 // pred_check
          %p478 = pneg %p205
        $region70: #{tpu_custom_call.1} parent=51 // pred_check_branch
          %480 = sbr.rel (%p478) target = $region72
        $region71: #{tpu_custom_call.1} parent=51 // pred_region
          %481 = dma.done %s474, 512
        $region72: #{tpu_custom_call.1} parent=51 // pred_fallthru
          _
        %s482 = sand.u32 %s30, 1
        %s483 = scalar_lea.sflag [#allocation5], %s482
        %s484 = sand.u32 %s220, 1
        %s485 = smul.addr %s484, 8
        %s486 = scalar_lea.vmem [#allocation12], %s485
        // Predicated region
        $region73: #{tpu_custom_call.1} parent=51 // pred_check
          %p487 = pneg %p233
        $region74: #{tpu_custom_call.1} parent=51 // pred_check_branch
          %489 = sbr.rel (%p487) target = $region76
        $region75: #{tpu_custom_call.1} parent=51 // pred_region
          %490 = dma.done %s483, 128
        $region76: #{tpu_custom_call.1} parent=51 // pred_fallthru
          _
        %p491 = pneg %p58
        %p492 = pneg %p55
        %p493 = pneg %p79
        %p494 = pneg %p76
        %p495 = pneg %p100
        %p496 = pneg %p97
        %p497 = pneg %p121
        %p498 = pneg %p118
        %s499 = sand.u32 %s30, 1
        %s500 = scalar_lea.sflag [#allocation5], %s499
        %s501 = sand.u32 %s136, 1
        %s502 = smul.addr %s501, 32
        %s503 = scalar_lea.vmem [#allocation9], %s502
        %p504 = pneg %p149
        %p505 = pneg %p146
        %s506 = sand.u32 %s30, 1
        %s507 = scalar_lea.sflag [#allocation5], %s506
        %s508 = sand.u32 %s164, 1
        %s509 = smul.addr %s508, 8
        %s510 = scalar_lea.vmem [#allocation10], %s509
        %p511 = pneg %p177
        %p512 = pneg %p174
        %s513 = sand.u32 %s30, 1
        %s514 = scalar_lea.sflag [#allocation5], %s513
        %s515 = sand.u32 %s192, 1
        %s516 = smul.addr %s515, 32
        %s517 = scalar_lea.vmem [#allocation11], %s516
        %p518 = pneg %p205
        %p519 = pneg %p202
        %s520 = sand.u32 %s30, 1
        %s521 = scalar_lea.sflag [#allocation5], %s520
        %s522 = sand.u32 %s220, 1
        %s523 = smul.addr %s522, 8
        %s524 = scalar_lea.vmem [#allocation12], %s523
        %p525 = pneg %p233
        %p526 = pneg %p230
        %p527 = pneg %p259
        %p528 = pneg %p256
        %s529 = sand.u32 %s246, 1
        %s530 = scalar_lea.sflag [#allocation6], %s529
        %s531 = sand.u32 %s246, 1
        %s532 = smul.addr %s531, 8
        %s533 = scalar_lea.vmem [#allocation13], %s532
        %p534 = pneg %p285
        %p535 = pneg %p282
        %s536 = sand.u32 %s30, 1
        %s537 = scalar_lea.sflag [#allocation15], %s536
        %s538 = sand.u32 %s272, 1
        %s539 = smul.addr %s538, 8
        %s540 = scalar_lea.vmem [#allocation14], %s539
        %p541 = pneg %p311
        %p542 = pneg %p308
        %s543 = sand.u32 %s30, 1
        %s544 = scalar_lea.sflag [#allocation15], %s543
        %s545 = sand.u32 %s298, 1
        %s546 = smul.addr %s545, 8
        %s547 = scalar_lea.vmem [#allocation16], %s546
        %s548 = sadd.s32 %s34, %s35
        %s549 = smul.u32 4, %s548
        %s550 = sadd.s32 %s34, %s35
        %s551 = sadd.s32 %s34, %s35
        %s552 = smul.u32 4, %s551
        %s553 = sadd.s32 %s34, %s35
        %p554 = scmp.eq.s32.totalorder %s35, 0
        // Predicated region
        $region77: #{tpu_custom_call.1} parent=51 // pred_check
          %p555 = pneg %p554
        $region78: #{tpu_custom_call.1} parent=51 // pred_check_branch
          %557 = sbr.rel (%p555) target = $region80
        $region79: #{tpu_custom_call.1} parent=51 // pred_region
          %558 = vst [vmem:[#allocation2] sm:$0xff] 0.0
          %559 = vst [vmem:[#allocation3] sm:$0xff] 0.0
        $region80: #{tpu_custom_call.1} parent=51 // pred_fallthru
          _
        %v560 = vld [vmem:[%s459] sm:$0xff]
        %v561 = vld [vmem:[%s459 + $0x8] sm:$0xff]
        %v562 = vld [vmem:[%s459 + $0x10] sm:$0xff]
        %v563 = vld [vmem:[%s459 + $0x18] sm:$0xff]
        %v564 = vld [vmem:[%s468] sm:$0xff]
        %v565 = vunpack.c.0.s8 %v564
        %v566 = vunpack.c.1.s8 %v564
        %v567 = vunpack.c.2.s8 %v564
        %v568 = vunpack.c.3.s8 %v564
        %v569 = vld [vmem:[%s2] sm:$0x1]
        %v570 = vlaneseq
        %v571 = vshrl.u32 %v570, 7
        %v572 = vsub.s32 0, %v571
        %v573 = vrot.slane %v569, %v572
        %vm574 = vcmp.eq.s32.totalorder %v565, %v573
        %vm575 = vcmp.eq.s32.totalorder %v566, %v573
        %vm576 = vcmp.eq.s32.totalorder %v567, %v573
        %vm577 = vcmp.eq.s32.totalorder %v568, %v573
        %v578 = vsel %vm574, %v560, 0.0
        %v579 = vsel %vm575, %v561, 0.0
        %v580 = vsel %vm576, %v562, 0.0
        %v581 = vsel %vm577, %v563, 0.0
        %v582 = vld [vmem:[#allocation2] sm:$0xff]
        %v583 = vadd.f32 %v578, %v579
        %v584 = vadd.f32 %v583, %v580
        %v585 = vadd.f32 %v584, %v581
        %v586 = vadd.f32 %v582, %v585
        %587 = vst [vmem:[#allocation2] sm:$0xff] %v586
        %v588 = vld [vmem:[%s477] sm:$0xff]
        %v589 = vld [vmem:[%s477 + $0x8] sm:$0xff]
        %v590 = vld [vmem:[%s477 + $0x10] sm:$0xff]
        %v591 = vld [vmem:[%s477 + $0x18] sm:$0xff]
        %v592 = vld [vmem:[%s486] sm:$0xff]
        %v593 = vunpack.c.0.s8 %v592
        %v594 = vunpack.c.1.s8 %v592
        %v595 = vunpack.c.2.s8 %v592
        %v596 = vunpack.c.3.s8 %v592
        %v597 = vld [vmem:[%s3] sm:$0x1]
        %v598 = vlaneseq
        %v599 = vshrl.u32 %v598, 7
        %v600 = vsub.s32 0, %v599
        %v601 = vrot.slane %v597, %v600
        %vm602 = vcmp.eq.s32.totalorder %v593, %v601
        %vm603 = vcmp.eq.s32.totalorder %v594, %v601
        %vm604 = vcmp.eq.s32.totalorder %v595, %v601
        %vm605 = vcmp.eq.s32.totalorder %v596, %v601
        %v606 = vsel %vm602, %v588, 0.0
        %v607 = vsel %vm603, %v589, 0.0
        %v608 = vsel %vm604, %v590, 0.0
        %v609 = vsel %vm605, %v591, 0.0
        %v610 = vld [vmem:[#allocation3] sm:$0xff]
        %v611 = vadd.f32 %v606, %v607
        %v612 = vadd.f32 %v611, %v608
        %v613 = vadd.f32 %v612, %v609
        %v614 = vadd.f32 %v610, %v613
        %615 = vst [vmem:[#allocation3] sm:$0xff] %v614
        // Predicated region
        $region81: #{tpu_custom_call.1} parent=51 // pred_check
          %p616 = pneg %p554
        $region82: #{tpu_custom_call.1} parent=51 // pred_check_branch
          %618 = sbr.rel (%p616) target = $region84
        $region83: #{tpu_custom_call.1} parent=51 // pred_region
          %v619 = vld [vmem:[#allocation2] sm:$0xff]
          %620 = vst [vmem:[%s533] sm:$0xff] %v619
          %v621 = vld [vmem:[#allocation3] sm:$0xff]
          %622 = vst [vmem:[%s540] sm:$0xff] %v621
          %v623 = vld [vmem:[#allocation4] sm:$0x3]
          %v624 = vld [vmem:[#allocation7] sm:$0x3]
          %v625 = vadd.f32 %v624, 1.0
          %v626 = vmul.f32 %v623, %v623
          %v627 = vsub.f32 %v625, %v626
          %v628 = vmul.f32 %v624, 1.442695
          %v629 = vpow.pop %v628
          %v630 = vsub.f32 %v627, %v629
          %vm631 = vcmask 254976
          %v632 = vsel %vm631, %v630, 0.0
          %633 = vadd.xlane.f32.xlu0 %v632
          %v634 = vpop.xlane.xlu0 %633
          %v635 = vrot.slane %v634, 4
          %v636 = vadd.f32 %v634, %v635
          %v637 = vrot.slane %v636, 2
          %v638 = vadd.f32 %v636, %v637
          %v639 = vrot.slane %v638, 1
          %v640 = vadd.f32 %v638, %v639
          %s641 = vtos %v640
          %s642 = smul.f32 %s641, -0.5
          %v643 = vstv %s642
          %644 = vst [vmem:[%s547] sm:$0xff] %v643
        $region84: #{tpu_custom_call.1} parent=51 // pred_fallthru
          _
        %s645 = sand.u32 %s246, 1
        %s646 = scalar_lea.sflag [#allocation6], %s645
        %s647 = sand.u32 %s246, 1
        %s648 = smul.addr %s647, 8
        %s649 = scalar_lea.vmem [#allocation13], %s648
        %s650 = sand.u32 %s30, 1
        %s651 = scalar_lea.sflag [#allocation15], %s650
        %s652 = sand.u32 %s272, 1
        %s653 = smul.addr %s652, 8
        %s654 = scalar_lea.vmem [#allocation14], %s653
        %s655 = sand.u32 %s30, 1
        %s656 = scalar_lea.sflag [#allocation15], %s655
        %s657 = sand.u32 %s298, 1
        %s658 = smul.addr %s657, 8
        %s659 = scalar_lea.vmem [#allocation16], %s658
        // Predicated region
        $region85: #{tpu_custom_call.1} parent=51 // pred_check
          %p660 = pneg %p256
        $region86: #{tpu_custom_call.1} parent=51 // pred_check_branch
          %662 = sbr.rel (%p660) target = $region88
        $region87: #{tpu_custom_call.1} parent=51 // pred_region
          %s664 = ssub.s32 128, 128
          %665 = vsyncadd %s646, %s664
          %s666 = smul.addr %s34, 128
          %s667 = scalar_lea.hbm %s8, %s666
          %s669 = sshll.u32 %s649, 4
          %s670 = int_to_ptr.vmem [resolvable:$true] %s669
          %672 = dma.vmem_to_hbm [thread:$0]  %s670, 128, %s667, %s646
        $region88: #{tpu_custom_call.1} parent=51 // pred_fallthru
          _
        // Predicated region
        $region89: #{tpu_custom_call.1} parent=51 // pred_check
          %p673 = pneg %p282
        $region90: #{tpu_custom_call.1} parent=51 // pred_check_branch
          %675 = sbr.rel (%p673) target = $region92
        $region91: #{tpu_custom_call.1} parent=51 // pred_region
          %s677 = ssub.s32 128, 128
          %678 = vsyncadd %s651, %s677
          %s679 = smul.addr %s34, 128
          %s680 = scalar_lea.hbm %s9, %s679
          %s682 = sshll.u32 %s654, 4
          %s683 = int_to_ptr.vmem [resolvable:$true] %s682
          %685 = dma.vmem_to_hbm [thread:$0]  %s683, 128, %s680, %s651
        $region92: #{tpu_custom_call.1} parent=51 // pred_fallthru
          _
        // Predicated region
        $region93: #{tpu_custom_call.1} parent=51 // pred_check
          %p686 = pneg %p308
        $region94: #{tpu_custom_call.1} parent=51 // pred_check_branch
          %688 = sbr.rel (%p686) target = $region96
        $region95: #{tpu_custom_call.1} parent=51 // pred_region
          %s690 = ssub.s32 128, 128
          %691 = vsyncadd %s656, %s690
          %s692 = smul.addr %s34, 128
          %s693 = scalar_lea.hbm %s10, %s692
          %s695 = sshll.u32 %s659, 4
          %s696 = int_to_ptr.vmem [resolvable:$true] %s695
          %698 = dma.vmem_to_hbm [thread:$0]  %s696, 128, %s693, %s656
        $region96: #{tpu_custom_call.1} parent=51 // pred_fallthru
          _
      $region52: #{tpu_custom_call.1} parent=5 // pred_fallthru
        _
      %p699 = scmp.le.s32.totalorder 2, %s25
      // Predicated region
      $region97: #{tpu_custom_call.1} parent=5 // pred_check
        %p700 = pneg %p699
      $region98: #{tpu_custom_call.1} parent=5 // pred_check_branch
        %702 = sbr.rel (%p700) target = $region100
      $region99: #{tpu_custom_call.1} parent=5 // pred_region
        %s703 = ssub.s32 %s25, 2
        // Predicated region
        $region101: #{tpu_custom_call.1} parent=99 // pred_check
          %p704 = pneg %p262
        $region102: #{tpu_custom_call.1} parent=99 // pred_check_branch
          %706 = sbr.rel (%p704) target = $region104
        $region103: #{tpu_custom_call.1} parent=99 // pred_region
          %s707 = sand.u32 %s247, 1
          %s708 = scalar_lea.sflag [#allocation6], %s707
          %s709 = sand.u32 %s247, 1
          %s710 = smul.addr %s709, 8
          %s711 = scalar_lea.vmem [#allocation13], %s710
          %712 = dma.done %s708, 128
        $region104: #{tpu_custom_call.1} parent=99 // pred_fallthru
          _
        // Predicated region
        $region105: #{tpu_custom_call.1} parent=99 // pred_check
          %p713 = pneg %p288
        $region106: #{tpu_custom_call.1} parent=99 // pred_check_branch
          %715 = sbr.rel (%p713) target = $region108
        $region107: #{tpu_custom_call.1} parent=99 // pred_region
          %s716 = sand.u32 %s31, 1
          %s717 = scalar_lea.sflag [#allocation15], %s716
          %s718 = sand.u32 %s273, 1
          %s719 = smul.addr %s718, 8
          %s720 = scalar_lea.vmem [#allocation14], %s719
          %721 = dma.done %s717, 128
        $region108: #{tpu_custom_call.1} parent=99 // pred_fallthru
          _
        // Predicated region
        $region109: #{tpu_custom_call.1} parent=99 // pred_check
          %p722 = pneg %p314
        $region110: #{tpu_custom_call.1} parent=99 // pred_check_branch
          %724 = sbr.rel (%p722) target = $region112
        $region111: #{tpu_custom_call.1} parent=99 // pred_region
          %s725 = sand.u32 %s31, 1
          %s726 = scalar_lea.sflag [#allocation15], %s725
          %s727 = sand.u32 %s299, 1
          %s728 = smul.addr %s727, 8
          %s729 = scalar_lea.vmem [#allocation16], %s728
          %730 = dma.done %s726, 128
        $region112: #{tpu_custom_call.1} parent=99 // pred_fallthru
          _
      $region100: #{tpu_custom_call.1} parent=5 // pred_fallthru
        _
    $region6: #{tpu_custom_call.1} parent=1 // loop_footer
      %s29 = sadd.s32 1, %s25
    $region7: #{tpu_custom_call.1} parent=1 // loop_footer_branch
      %24 = sbr.rel target = $region3
    $region8: #{tpu_custom_call.1} parent=1 // loop_exit
      _
    %731 = vsyncpa [#allocation5], 1
    %s732 = scalar_lea.sflag [#allocation5], 1
    %733 = vsyncpa %s732, 1
    %734 = vsyncpa [#allocation8], 1
    %735 = vsyncpa [#allocation6], 1
    %s736 = scalar_lea.sflag [#allocation6], 1
    %737 = vsyncpa %s736, 1
    %738 = vsyncpa [#allocation15], 1
    %s739 = scalar_lea.sflag [#allocation15], 1
    %740 = vsyncpa %s739, 1

</llo_original>
